<compile_context>
chip_gen: v7x
topology: tpu7x:2x2x1
jax: 0.10.0
libtpu: 0.0.40
codegen_flags: <defaults>
</compile_context>

<pallas_src>
import functools
import math

import jax
import jax.numpy as jnp
import numpy as np
from jax.experimental import pallas as pl
from jax.experimental.pallas import tpu as pltpu


# ------------------------------ tiling helper --------------------------------
def _tile(dim, target, gran):
    """Largest tile <= target that evenly divides `dim` and is a multiple of
    `gran`; falls back to the full dim (always legal as a block size)."""
    if dim <= target:
        return dim
    t = (target // gran) * gran
    while t >= gran:
        if dim % t == 0:
            return t
        t -= gran
    return dim


# ----------------------------- Linear kernel ---------------------------------
def _linear_kernel(x_ref, w_ref, b_ref, o_ref, acc_ref):
    k = pl.program_id(2)

    @pl.when(k == 0)
    def _init():
        acc_ref[...] = jnp.zeros_like(acc_ref)

    # bf16 MXU operands, f32 accumulation.
    acc_ref[...] += jnp.dot(
        x_ref[...].astype(jnp.bfloat16),
        w_ref[...],
        preferred_element_type=jnp.float32,
    )

    @pl.when(k == pl.num_programs(2) - 1)
    def _store():
        o_ref[...] = (acc_ref[...] + b_ref[...]).astype(o_ref.dtype)


def linear_pallas(x, w_t, b, *, tm=256, tn=256, tk=256):
    """y = x @ w_t + b.  x: (M,K) f32, w_t: (K,N) bf16 (pre-transposed), b: (N,) f32."""
    M, K = x.shape
    N = w_t.shape[1]
    tm = _tile(M, tm, 8)
    tn = _tile(N, tn, 128)
    tk = _tile(K, tk, 128)
    b2 = b.reshape(1, N)
    return pl.pallas_call(
        _linear_kernel,
        grid=(M // tm, N // tn, K // tk),
        in_specs=[
            pl.BlockSpec((tm, tk), lambda i, j, k: (i, k)),
            pl.BlockSpec((tk, tn), lambda i, j, k: (k, j)),
            pl.BlockSpec((1, tn), lambda i, j, k: (0, j)),
        ],
        out_specs=pl.BlockSpec((tm, tn), lambda i, j, k: (i, j)),
        out_shape=jax.ShapeDtypeStruct((M, N), jnp.float32),
        scratch_shapes=[pltpu.VMEM((tm, tn), jnp.float32)],
        compiler_params=pltpu.CompilerParams(
            dimension_semantics=("parallel", "parallel", "arbitrary")
        ),
    )(x, w_t, b2)


# --------------------------- Attention kernel ---------------------------------
def _attn_kernel(q_ref, k_ref, v_ref, o_ref, *, h, d_k):
    # q_ref/k_ref/v_ref/o_ref: (S, d_model) slabs for one batch; heads are
    # contiguous d_k-wide column groups along the lane axis.
    # 1/sqrt(d_k) has already been folded into W_q / b_q.
    for head in range(h):
        lo, hi = head * d_k, (head + 1) * d_k
        q = q_ref[:, lo:hi].astype(jnp.bfloat16)
        k = k_ref[:, lo:hi].astype(jnp.bfloat16)
        v = v_ref[:, lo:hi].astype(jnp.bfloat16)

        # scores = q @ k^T via contraction on d_k -- no in-kernel transpose.
        scores = jax.lax.dot_general(
            q, k, (((1,), (1,)), ((), ())), preferred_element_type=jnp.float32
        )
        # TODO(synk): mask path (masked_fill with -1e9) omitted; forward exercised with mask=None.
        m = jnp.max(scores, axis=-1, keepdims=True)
        e = jnp.exp(scores - m)
        l = jnp.sum(e, axis=-1, keepdims=True)
        p = e * pl.reciprocal(l, approx=True)  # EUP reciprocal instead of VPU divide
        # TODO(synk): dropout on p_attn omitted (eval-mode identity).
        ctx = jnp.dot(p.astype(jnp.bfloat16), v, preferred_element_type=jnp.float32)
        o_ref[:, lo:hi] = ctx.astype(o_ref.dtype)


def attention_pallas(q, k, v, h):
    """q, k, v: (B, S, d_model) slabs -> context (B, S, d_model) slab."""
    B, S, d_model = q.shape
    d_k = d_model // h
    spec = pl.BlockSpec((None, S, d_model), lambda b: (b, 0, 0))
    kernel = functools.partial(_attn_kernel, h=h, d_k=d_k)
    # TODO(synk): for long sequences add flash-style (tq, tkv) tiling with online
    # softmax scratch so the SxS scores never exceed scoped VMEM (v7x: 64 MiB).
    return pl.pallas_call(
        kernel,
        grid=(B,),
        in_specs=[spec, spec, spec],
        out_specs=spec,
        out_shape=jax.ShapeDtypeStruct((B, S, d_model), jnp.float32),
        compiler_params=pltpu.CompilerParams(dimension_semantics=("parallel",)),
    )(q, k, v)


# ------------------------ MultiHeadedAttention forward ------------------------
def prepare_params(params, h, d_model):
    """Pre-transpose PyTorch (out,in) weights to (in,out), cast to bf16 once,
    and fold the 1/sqrt(d_k) attention scale into W_q / b_q."""
    d_k = d_model // h
    scale = jnp.float32(1.0 / math.sqrt(d_k))
    return {
        "w_q": (params["w_q"].T * scale).astype(jnp.bfloat16),
        "b_q": params["b_q"] * scale,
        "w_k": params["w_k"].T.astype(jnp.bfloat16),
        "b_k": params["b_k"],
        "w_v": params["w_v"].T.astype(jnp.bfloat16),
        "b_v": params["b_v"],
        "w_o": params["w_o"].T.astype(jnp.bfloat16),
        "b_o": params["b_o"],
    }


def multi_headed_attention(prepped, query, key, value, h):
    B, S, d_model = query.shape
    assert d_model % h == 0

    def proj(x, w_t, b):
        y = linear_pallas(x.reshape(B * S, d_model), w_t, b)
        return y.reshape(B, S, d_model)  # free reshape; heads stay on lanes

    q = proj(query, prepped["w_q"], prepped["b_q"])  # pre-scaled by 1/sqrt(d_k)
    k = proj(key, prepped["w_k"], prepped["b_k"])
    v = proj(value, prepped["w_v"], prepped["b_v"])

    ctx = attention_pallas(q, k, v, h)               # (B, S, d_model), no head transposes
    out = linear_pallas(ctx.reshape(B * S, d_model), prepped["w_o"], prepped["b_o"])
    return out.reshape(B, S, d_model)


def init_params(rng, d_model):
    """Deterministic PyTorch-Linear-style init: U(-1/sqrt(in), 1/sqrt(in))."""
    keys = jax.random.split(rng, 8)
    bound = 1.0 / math.sqrt(d_model)
    params = {}
    for i, n in enumerate(("q", "k", "v", "o")):
        params[f"w_{n}"] = jax.random.uniform(
            keys[2 * i], (d_model, d_model), jnp.float32, -bound, bound
        )
        params[f"b_{n}"] = jax.random.uniform(
            keys[2 * i + 1], (d_model,), jnp.float32, -bound, bound
        )
    return params


# ------------------------------- Reference ------------------------------------
def _reference(params, q, k, v, h):
    B, S, d_model = q.shape
    d_k = d_model // h

    def lin(x, w, b):
        return x @ w.T + b

    def split(x):
        return x.reshape(B, S, h, d_k).transpose(0, 2, 1, 3)

    Q = split(lin(q, params["w_q"], params["b_q"]))
    K = split(lin(k, params["w_k"], params["b_k"]))
    V = split(lin(v, params["w_v"], params["b_v"]))
    sc = jnp.einsum("bhqd,bhkd->bhqk", Q, K) / math.sqrt(d_k)
    p = jax.nn.softmax(sc, axis=-1)
    ctx = jnp.einsum("bhqk,bhkd->bhqd", p, V)
    ctx = ctx.transpose(0, 2, 1, 3).reshape(B, S, d_model)
    return lin(ctx, params["w_o"], params["b_o"])


if __name__ == "__main__":
    B, S, d_model, h = 2, 8, 32, 4
    root = jax.random.PRNGKey(0)
    kq, kk, kv, kp = jax.random.split(root, 4)
    query = jax.random.normal(kq, (B, S, d_model), jnp.float32)
    key_in = jax.random.normal(kk, (B, S, d_model), jnp.float32)
    value = jax.random.normal(kv, (B, S, d_model), jnp.float32)
    params = init_params(kp, d_model)
    prepped = prepare_params(params, h, d_model)

    fwd = jax.jit(multi_headed_attention, static_argnums=(4,))
    out = fwd(prepped, query, key_in, value, h)
    out = jax.block_until_ready(out)

    expected = _reference(params, query, key_in, value, h)
    # bf16 MXU operands (f32 accumulation) -> relaxed tolerance vs f32 reference.
    np.testing.assert_allclose(
        np.asarray(out), np.asarray(expected), rtol=2e-2, atol=2e-2
    )
    print("KERNEL_OK")
</pallas_src>

<mosaic_0001>
module attributes {stable_mosaic.version = 11 : i64} {
  func.func @_linear_kernel(%arg0: i32, %arg1: i32, %arg2: i32, %arg3: memref<16x32xf32, #tpu.memory_space<vmem>>, %arg4: memref<32x32xbf16, #tpu.memory_space<vmem>>, %arg5: memref<1x32xf32, #tpu.memory_space<vmem>>, %arg6: memref<16x32xf32, #tpu.memory_space<vmem>>, %arg7: memref<16x32xf32, #tpu.memory_space<vmem>>) attributes {dimension_semantics = [#tpu.dimension_semantics<parallel>, #tpu.dimension_semantics<parallel>, #tpu.dimension_semantics<arbitrary>], iteration_bounds = array<i64: 1, 1, 1>, scalar_prefetch = 0 : i64, scratch_operands = 1 : i64, tpu.core_type = #tpu.core_type<tc>, window_params = [{transform_indices = @transform_0, window_bounds = array<i64: 16, 32>}, {transform_indices = @transform_1, window_bounds = array<i64: 32, 32>}, {transform_indices = @transform_2, window_bounds = array<i64: 1, 32>}, {transform_indices = @transform_3, window_bounds = array<i64: 16, 32>}]} {
    %c0_i32 = arith.constant 0 : i32
    %0 = arith.cmpi eq, %arg2, %c0_i32 : i32
    %1 = arith.extui %0 : i1 to i32
    %c0_i32_0 = arith.constant 0 : i32
    %2 = arith.cmpi ne, %1, %c0_i32_0 : i32
    scf.if %2 {
      %cst_10 = arith.constant 0.000000e+00 : f32
      %13 = vector.broadcast %cst_10 : f32 to vector<16x32xf32>
      %c0_11 = arith.constant 0 : index
      %c0_12 = arith.constant 0 : index
      %14 = vector.load %arg7[%c0_11, %c0_12] : memref<16x32xf32, #tpu.memory_space<vmem>>, vector<16x32xf32>
      tpu.vector_store %arg7[%c0_11, %c0_12], %13 {strides = array<i32>} : memref<16x32xf32, #tpu.memory_space<vmem>>, vector<16x32xf32>,
    } else {
    }
    %c0 = arith.constant 0 : index
    %c0_1 = arith.constant 0 : index
    %3 = vector.load %arg7[%c0, %c0_1] : memref<16x32xf32, #tpu.memory_space<vmem>>, vector<16x32xf32>
    %c0_2 = arith.constant 0 : index
    %c0_3 = arith.constant 0 : index
    %4 = vector.load %arg3[%c0_2, %c0_3] : memref<16x32xf32, #tpu.memory_space<vmem>>, vector<16x32xf32>
    %5 = arith.truncf %4 : vector<16x32xf32> to vector<16x32xbf16>
    %c0_4 = arith.constant 0 : index
    %c0_5 = arith.constant 0 : index
    %6 = vector.load %arg4[%c0_4, %c0_5] : memref<32x32xbf16, #tpu.memory_space<vmem>>, vector<32x32xbf16>
    %cst = arith.constant dense<0.000000e+00> : vector<16x32xf32>
    %7 = tpu.matmul %5, %6, %cst {dimension_numbers = #tpu.dot_dimension_numbers<[1], [0], [0], [1], [0, 0, 1, 1], [], []>} : vector<16x32xbf16>, vector<32x32xbf16>, vector<16x32xf32> -> vector<16x32xf32>
    %8 = arith.addf %3, %7 : vector<16x32xf32>
    %c0_6 = arith.constant 0 : index
    %c0_7 = arith.constant 0 : index
    %9 = vector.load %arg7[%c0_6, %c0_7] : memref<16x32xf32, #tpu.memory_space<vmem>>, vector<16x32xf32>
    tpu.vector_store %arg7[%c0_6, %c0_7], %8 {strides = array<i32>} : memref<16x32xf32, #tpu.memory_space<vmem>>, vector<16x32xf32>,
    %c0_i32_8 = arith.constant 0 : i32
    %10 = arith.cmpi eq, %arg2, %c0_i32_8 : i32
    %11 = arith.extui %10 : i1 to i32
    %c0_i32_9 = arith.constant 0 : i32
    %12 = arith.cmpi ne, %11, %c0_i32_9 : i32
    scf.if %12 {
      %c0_10 = arith.constant 0 : index
      %c0_11 = arith.constant 0 : index
      %13 = vector.load %arg7[%c0_10, %c0_11] : memref<16x32xf32, #tpu.memory_space<vmem>>, vector<16x32xf32>
      %c0_12 = arith.constant 0 : index
      %c0_13 = arith.constant 0 : index
      %14 = vector.load %arg5[%c0_12, %c0_13] : memref<1x32xf32, #tpu.memory_space<vmem>>, vector<1x32xf32>
      %15 = vector.broadcast %14 : vector<1x32xf32> to vector<16x32xf32>
      %16 = arith.addf %13, %15 : vector<16x32xf32>
      %c0_14 = arith.constant 0 : index
      %c0_15 = arith.constant 0 : index
      %17 = vector.load %arg6[%c0_14, %c0_15] : memref<16x32xf32, #tpu.memory_space<vmem>>, vector<16x32xf32>
      tpu.vector_store %arg6[%c0_14, %c0_15], %16 {strides = array<i32>} : memref<16x32xf32, #tpu.memory_space<vmem>>, vector<16x32xf32>,
    } else {
    }
    return
  }
  func.func @transform_0(%arg0: i32, %arg1: i32, %arg2: i32) -> (i32, i32) {
    %c0_i32 = arith.constant 0 : i32
    return %arg0, %arg2 : i32, i32
  }
  func.func @transform_1(%arg0: i32, %arg1: i32, %arg2: i32) -> (i32, i32) {
    %c0_i32 = arith.constant 0 : i32
    return %arg2, %arg1 : i32, i32
  }
  func.func @transform_2(%arg0: i32, %arg1: i32, %arg2: i32) -> (i32, i32) {
    %c0_i32 = arith.constant 0 : i32
    %c0_i32_0 = arith.constant 0 : i32
    return %c0_i32, %arg1 : i32, i32
  }
  func.func @transform_3(%arg0: i32, %arg1: i32, %arg2: i32) -> (i32, i32) {
    %c0_i32 = arith.constant 0 : i32
    return %arg0, %arg1 : i32, i32
  }
}

module attributes {stable_mosaic.version = 11 : i64} {
  func.func @_linear_kernel(%arg0: i32, %arg1: i32, %arg2: i32, %arg3: memref<16x32xf32, #tpu.memory_space<vmem>>, %arg4: memref<32x32xbf16, #tpu.memory_space<vmem>>, %arg5: memref<1x32xf32, #tpu.memory_space<vmem>>, %arg6: memref<16x32xf32, #tpu.memory_space<vmem>>, %arg7: memref<16x32xf32, #tpu.memory_space<vmem>>) attributes {dimension_semantics = [#tpu.dimension_semantics<parallel>, #tpu.dimension_semantics<parallel>, #tpu.dimension_semantics<arbitrary>], iteration_bounds = array<i64: 1, 1, 1>, scalar_prefetch = 0 : i64, scratch_operands = 1 : i64, tpu.core_type = #tpu.core_type<tc>, window_params = [{transform_indices = @transform_0, window_bounds = array<i64: 16, 32>}, {transform_indices = @transform_1, window_bounds = array<i64: 32, 32>}, {transform_indices = @transform_2, window_bounds = array<i64: 1, 32>}, {transform_indices = @transform_3, window_bounds = array<i64: 16, 32>}]} {
    %c0_i32 = arith.constant 0 : i32
    %0 = arith.cmpi eq, %arg2, %c0_i32 : i32
    %1 = arith.extui %0 : i1 to i32
    %c0_i32_0 = arith.constant 0 : i32
    %2 = arith.cmpi ne, %1, %c0_i32_0 : i32
    scf.if %2 {
      %cst_10 = arith.constant 0.000000e+00 : f32
      %13 = vector.broadcast %cst_10 : f32 to vector<16x32xf32>
      %c0_11 = arith.constant 0 : index
      %c0_12 = arith.constant 0 : index
      %14 = vector.load %arg7[%c0_11, %c0_12] : memref<16x32xf32, #tpu.memory_space<vmem>>, vector<16x32xf32>
      tpu.vector_store %arg7[%c0_11, %c0_12], %13 {strides = array<i32>} : memref<16x32xf32, #tpu.memory_space<vmem>>, vector<16x32xf32>,
    } else {
    }
    %c0 = arith.constant 0 : index
    %c0_1 = arith.constant 0 : index
    %3 = vector.load %arg7[%c0, %c0_1] : memref<16x32xf32, #tpu.memory_space<vmem>>, vector<16x32xf32>
    %c0_2 = arith.constant 0 : index
    %c0_3 = arith.constant 0 : index
    %4 = vector.load %arg3[%c0_2, %c0_3] : memref<16x32xf32, #tpu.memory_space<vmem>>, vector<16x32xf32>
    %5 = arith.truncf %4 : vector<16x32xf32> to vector<16x32xbf16>
    %c0_4 = arith.constant 0 : index
    %c0_5 = arith.constant 0 : index
    %6 = vector.load %arg4[%c0_4, %c0_5] : memref<32x32xbf16, #tpu.memory_space<vmem>>, vector<32x32xbf16>
    %cst = arith.constant dense<0.000000e+00> : vector<16x32xf32>
    %7 = tpu.matmul %5, %6, %cst {dimension_numbers = #tpu.dot_dimension_numbers<[1], [0], [0], [1], [0, 0, 1, 1], [], []>} : vector<16x32xbf16>, vector<32x32xbf16>, vector<16x32xf32> -> vector<16x32xf32>
    %8 = arith.addf %3, %7 : vector<16x32xf32>
    %c0_6 = arith.constant 0 : index
    %c0_7 = arith.constant 0 : index
    %9 = vector.load %arg7[%c0_6, %c0_7] : memref<16x32xf32, #tpu.memory_space<vmem>>, vector<16x32xf32>
    tpu.vector_store %arg7[%c0_6, %c0_7], %8 {strides = array<i32>} : memref<16x32xf32, #tpu.memory_space<vmem>>, vector<16x32xf32>,
    %c0_i32_8 = arith.constant 0 : i32
    %10 = arith.cmpi eq, %arg2, %c0_i32_8 : i32
    %11 = arith.extui %10 : i1 to i32
    %c0_i32_9 = arith.constant 0 : i32
    %12 = arith.cmpi ne, %11, %c0_i32_9 : i32
    scf.if %12 {
      %c0_10 = arith.constant 0 : index
      %c0_11 = arith.constant 0 : index
      %13 = vector.load %arg7[%c0_10, %c0_11] : memref<16x32xf32, #tpu.memory_space<vmem>>, vector<16x32xf32>
      %c0_12 = arith.constant 0 : index
      %c0_13 = arith.constant 0 : index
      %14 = vector.load %arg5[%c0_12, %c0_13] : memref<1x32xf32, #tpu.memory_space<vmem>>, vector<1x32xf32>
      %15 = vector.broadcast %14 : vector<1x32xf32> to vector<16x32xf32>
      %16 = arith.addf %13, %15 : vector<16x32xf32>
      %c0_14 = arith.constant 0 : index
      %c0_15 = arith.constant 0 : index
      %17 = vector.load %arg6[%c0_14, %c0_15] : memref<16x32xf32, #tpu.memory_space<vmem>>, vector<16x32xf32>
      tpu.vector_store %arg6[%c0_14, %c0_15], %16 {strides = array<i32>} : memref<16x32xf32, #tpu.memory_space<vmem>>, vector<16x32xf32>,
    } else {
    }
    return
  }
  func.func @transform_0(%arg0: i32, %arg1: i32, %arg2: i32) -> (i32, i32) {
    %c0_i32 = arith.constant 0 : i32
    return %arg0, %arg2 : i32, i32
  }
  func.func @transform_1(%arg0: i32, %arg1: i32, %arg2: i32) -> (i32, i32) {
    %c0_i32 = arith.constant 0 : i32
    return %arg2, %arg1 : i32, i32
  }
  func.func @transform_2(%arg0: i32, %arg1: i32, %arg2: i32) -> (i32, i32) {
    %c0_i32 = arith.constant 0 : i32
    %c0_i32_0 = arith.constant 0 : i32
    return %c0_i32, %arg1 : i32, i32
  }
  func.func @transform_3(%arg0: i32, %arg1: i32, %arg2: i32) -> (i32, i32) {
    %c0_i32 = arith.constant 0 : i32
    return %arg0, %arg1 : i32, i32
  }
}

module attributes {stable_mosaic.version = 11 : i64} {
  func.func @_attn_kernel(%arg0: i32, %arg1: memref<1x8x32xf32, #tpu.memory_space<vmem>>, %arg2: memref<1x8x32xf32, #tpu.memory_space<vmem>>, %arg3: memref<1x8x32xf32, #tpu.memory_space<vmem>>, %arg4: memref<1x8x32xf32, #tpu.memory_space<vmem>>) attributes {dimension_semantics = [#tpu.dimension_semantics<parallel>], iteration_bounds = array<i64: 2>, scalar_prefetch = 0 : i64, scratch_operands = 0 : i64, tpu.core_type = #tpu.core_type<tc>, window_params = [{transform_indices = @transform_0, window_bounds = array<i64: 1, 8, 32>}, {transform_indices = @transform_1, window_bounds = array<i64: 1, 8, 32>}, {transform_indices = @transform_2, window_bounds = array<i64: 1, 8, 32>}, {transform_indices = @transform_3, window_bounds = array<i64: 1, 8, 32>}]} {
    %c0 = arith.constant 0 : index
    %c0_0 = arith.constant 0 : index
    %c0_1 = arith.constant 0 : index
    %0 = vector.load %arg1[%c0, %c0_0, %c0_1] : memref<1x8x32xf32, #tpu.memory_space<vmem>>, vector<1x8x8xf32>
    %1 = vector.shape_cast %0 : vector<1x8x8xf32> to vector<8x8xf32>
    %2 = arith.truncf %1 : vector<8x8xf32> to vector<8x8xbf16>
    %c0_2 = arith.constant 0 : index
    %c0_3 = arith.constant 0 : index
    %c0_4 = arith.constant 0 : index
    %3 = vector.load %arg2[%c0_2, %c0_3, %c0_4] : memref<1x8x32xf32, #tpu.memory_space<vmem>>, vector<1x8x8xf32>
    %4 = vector.shape_cast %3 : vector<1x8x8xf32> to vector<8x8xf32>
    %5 = arith.truncf %4 : vector<8x8xf32> to vector<8x8xbf16>
    %c0_5 = arith.constant 0 : index
    %c0_6 = arith.constant 0 : index
    %c0_7 = arith.constant 0 : index
    %6 = vector.load %arg3[%c0_5, %c0_6, %c0_7] : memref<1x8x32xf32, #tpu.memory_space<vmem>>, vector<1x8x8xf32>
    %7 = vector.shape_cast %6 : vector<1x8x8xf32> to vector<8x8xf32>
    %8 = arith.truncf %7 : vector<8x8xf32> to vector<8x8xbf16>
    %cst = arith.constant dense<0.000000e+00> : vector<8x8xf32>
    %9 = tpu.matmul %2, %5, %cst {dimension_numbers = #tpu.dot_dimension_numbers<[1], [1], [0], [0], [0, 0, 1, 0], [], []>} : vector<8x8xbf16>, vector<8x8xbf16>, vector<8x8xf32> -> vector<8x8xf32>
    %cst_8 = arith.constant dense<0xFF800000> : vector<8xf32>
    %10 = vector.multi_reduction <maximumf>, %9, %cst_8 [1] : vector<8x8xf32> to vector<8xf32>
    %11 = vector.shape_cast %10 : vector<8xf32> to vector<8x1xf32>
    %12 = vector.broadcast %11 : vector<8x1xf32> to vector<8x8xf32>
    %13 = arith.subf %9, %12 : vector<8x8xf32>
    %14 = math.exp %13 : vector<8x8xf32>
    %cst_9 = arith.constant dense<0.000000e+00> : vector<8xf32>
    %15 = vector.multi_reduction <add>, %14, %cst_9 [1] : vector<8x8xf32> to vector<8xf32>
    %16 = vector.shape_cast %15 : vector<8xf32> to vector<8x1xf32>
    %17 = tpu.reciprocal %16 {approx = true} : vector<8x1xf32> -> vector<8x1xf32>
    %18 = vector.broadcast %17 : vector<8x1xf32> to vector<8x8xf32>
    %19 = arith.mulf %14, %18 : vector<8x8xf32>
    %20 = arith.truncf %19 : vector<8x8xf32> to vector<8x8xbf16>
    %cst_10 = arith.constant dense<0.000000e+00> : vector<8x8xf32>
    %21 = tpu.matmul %20, %8, %cst_10 {dimension_numbers = #tpu.dot_dimension_numbers<[1], [0], [0], [1], [0, 0, 1, 1], [], []>} : vector<8x8xbf16>, vector<8x8xbf16>, vector<8x8xf32> -> vector<8x8xf32>
    %c0_11 = arith.constant 0 : index
    %c0_12 = arith.constant 0 : index
    %c0_13 = arith.constant 0 : index
    %22 = vector.load %arg4[%c0_11, %c0_12, %c0_13] : memref<1x8x32xf32, #tpu.memory_space<vmem>>, vector<1x8x8xf32>
    %23 = vector.shape_cast %22 : vector<1x8x8xf32> to vector<8x8xf32>
    %24 = vector.shape_cast %21 : vector<8x8xf32> to vector<1x8x8xf32>
    tpu.vector_store %arg4[%c0_11, %c0_12, %c0_13], %24 {strides = array<i32>} : memref<1x8x32xf32, #tpu.memory_space<vmem>>, vector<1x8x8xf32>,
    %c0_14 = arith.constant 0 : index
    %c0_15 = arith.constant 0 : index
    %c8 = arith.constant 8 : index
    %25 = vector.load %arg1[%c0_14, %c0_15, %c8] : memref<1x8x32xf32, #tpu.memory_space<vmem>>, vector<1x8x8xf32>
    %26 = vector.shape_cast %25 : vector<1x8x8xf32> to vector<8x8xf32>
    %27 = arith.truncf %26 : vector<8x8xf32> to vector<8x8xbf16>
    %c0_16 = arith.constant 0 : index
    %c0_17 = arith.constant 0 : index
    %c8_18 = arith.constant 8 : index
    %28 = vector.load %arg2[%c0_16, %c0_17, %c8_18] : memref<1x8x32xf32, #tpu.memory_space<vmem>>, vector<1x8x8xf32>
    %29 = vector.shape_cast %28 : vector<1x8x8xf32> to vector<8x8xf32>
    %30 = arith.truncf %29 : vector<8x8xf32> to vector<8x8xbf16>
    %c0_19 = arith.constant 0 : index
    %c0_20 = arith.constant 0 : index
    %c8_21 = arith.constant 8 : index
    %31 = vector.load %arg3[%c0_19, %c0_20, %c8_21] : memref<1x8x32xf32, #tpu.memory_space<vmem>>, vector<1x8x8xf32>
    %32 = vector.shape_cast %31 : vector<1x8x8xf32> to vector<8x8xf32>
    %33 = arith.truncf %32 : vector<8x8xf32> to vector<8x8xbf16>
    %cst_22 = arith.constant dense<0.000000e+00> : vector<8x8xf32>
    %34 = tpu.matmul %27, %30, %cst_22 {dimension_numbers = #tpu.dot_dimension_numbers<[1], [1], [0], [0], [0, 0, 1, 0], [], []>} : vector<8x8xbf16>, vector<8x8xbf16>, vector<8x8xf32> -> vector<8x8xf32>
    %cst_23 = arith.constant dense<0xFF800000> : vector<8xf32>
    %35 = vector.multi_reduction <maximumf>, %34, %cst_23 [1] : vector<8x8xf32> to vector<8xf32>
    %36 = vector.shape_cast %35 : vector<8xf32> to vector<8x1xf32>
    %37 = vector.broadcast %36 : vector<8x1xf32> to vector<8x8xf32>
    %38 = arith.subf %34, %37 : vector<8x8xf32>
    %39 = math.exp %38 : vector<8x8xf32>
    %cst_24 = arith.constant dense<0.000000e+00> : vector<8xf32>
    %40 = vector.multi_reduction <add>, %39, %cst_24 [1] : vector<8x8xf32> to vector<8xf32>
    %41 = vector.shape_cast %40 : vector<8xf32> to vector<8x1xf32>
    %42 = tpu.reciprocal %41 {approx = true} : vector<8x1xf32> -> vector<8x1xf32>
    %43 = vector.broadcast %42 : vector<8x1xf32> to vector<8x8xf32>
    %44 = arith.mulf %39, %43 : vector<8x8xf32>
    %45 = arith.truncf %44 : vector<8x8xf32> to vector<8x8xbf16>
    %cst_25 = arith.constant dense<0.000000e+00> : vector<8x8xf32>
    %46 = tpu.matmul %45, %33, %cst_25 {dimension_numbers = #tpu.dot_dimension_numbers<[1], [0], [0], [1], [0, 0, 1, 1], [], []>} : vector<8x8xbf16>, vector<8x8xbf16>, vector<8x8xf32> -> vector<8x8xf32>
    %c0_26 = arith.constant 0 : index
    %c0_27 = arith.constant 0 : index
    %c8_28 = arith.constant 8 : index
    %47 = vector.load %arg4[%c0_26, %c0_27, %c8_28] : memref<1x8x32xf32, #tpu.memory_space<vmem>>, vector<1x8x8xf32>
    %48 = vector.shape_cast %47 : vector<1x8x8xf32> to vector<8x8xf32>
    %49 = vector.shape_cast %46 : vector<8x8xf32> to vector<1x8x8xf32>
    tpu.vector_store %arg4[%c0_26, %c0_27, %c8_28], %49 {strides = array<i32>} : memref<1x8x32xf32, #tpu.memory_space<vmem>>, vector<1x8x8xf32>,
    %c0_29 = arith.constant 0 : index
    %c0_30 = arith.constant 0 : index
    %c16 = arith.constant 16 : index
    %50 = vector.load %arg1[%c0_29, %c0_30, %c16] : memref<1x8x32xf32, #tpu.memory_space<vmem>>, vector<1x8x8xf32>
    %51 = vector.shape_cast %50 : vector<1x8x8xf32> to vector<8x8xf32>
    %52 = arith.truncf %51 : vector<8x8xf32> to vector<8x8xbf16>
    %c0_31 = arith.constant 0 : index
    %c0_32 = arith.constant 0 : index
    %c16_33 = arith.constant 16 : index
    %53 = vector.load %arg2[%c0_31, %c0_32, %c16_33] : memref<1x8x32xf32, #tpu.memory_space<vmem>>, vector<1x8x8xf32>
    %54 = vector.shape_cast %53 : vector<1x8x8xf32> to vector<8x8xf32>
    %55 = arith.truncf %54 : vector<8x8xf32> to vector<8x8xbf16>
    %c0_34 = arith.constant 0 : index
    %c0_35 = arith.constant 0 : index
    %c16_36 = arith.constant 16 : index
    %56 = vector.load %arg3[%c0_34, %c0_35, %c16_36] : memref<1x8x32xf32, #tpu.memory_space<vmem>>, vector<1x8x8xf32>
    %57 = vector.shape_cast %56 : vector<1x8x8xf32> to vector<8x8xf32>
    %58 = arith.truncf %57 : vector<8x8xf32> to vector<8x8xbf16>
    %cst_37 = arith.constant dense<0.000000e+00> : vector<8x8xf32>
    %59 = tpu.matmul %52, %55, %cst_37 {dimension_numbers = #tpu.dot_dimension_numbers<[1], [1], [0], [0], [0, 0, 1, 0], [], []>} : vector<8x8xbf16>, vector<8x8xbf16>, vector<8x8xf32> -> vector<8x8xf32>
    %cst_38 = arith.constant dense<0xFF800000> : vector<8xf32>
    %60 = vector.multi_reduction <maximumf>, %59, %cst_38 [1] : vector<8x8xf32> to vector<8xf32>
    %61 = vector.shape_cast %60 : vector<8xf32> to vector<8x1xf32>
    %62 = vector.broadcast %61 : vector<8x1xf32> to vector<8x8xf32>
    %63 = arith.subf %59, %62 : vector<8x8xf32>
    %64 = math.exp %63 : vector<8x8xf32>
    %cst_39 = arith.constant dense<0.000000e+00> : vector<8xf32>
    %65 = vector.multi_reduction <add>, %64, %cst_39 [1] : vector<8x8xf32> to vector<8xf32>
    %66 = vector.shape_cast %65 : vector<8xf32> to vector<8x1xf32>
    %67 = tpu.reciprocal %66 {approx = true} : vector<8x1xf32> -> vector<8x1xf32>
    %68 = vector.broadcast %67 : vector<8x1xf32> to vector<8x8xf32>
    %69 = arith.mulf %64, %68 : vector<8x8xf32>
    %70 = arith.truncf %69 : vector<8x8xf32> to vector<8x8xbf16>
    %cst_40 = arith.constant dense<0.000000e+00> : vector<8x8xf32>
    %71 = tpu.matmul %70, %58, %cst_40 {dimension_numbers = #tpu.dot_dimension_numbers<[1], [0], [0], [1], [0, 0, 1, 1], [], []>} : vector<8x8xbf16>, vector<8x8xbf16>, vector<8x8xf32> -> vector<8x8xf32>
    %c0_41 = arith.constant 0 : index
    %c0_42 = arith.constant 0 : index
    %c16_43 = arith.constant 16 : index
    %72 = vector.load %arg4[%c0_41, %c0_42, %c16_43] : memref<1x8x32xf32, #tpu.memory_space<vmem>>, vector<1x8x8xf32>
    %73 = vector.shape_cast %72 : vector<1x8x8xf32> to vector<8x8xf32>
    %74 = vector.shape_cast %71 : vector<8x8xf32> to vector<1x8x8xf32>
    tpu.vector_store %arg4[%c0_41, %c0_42, %c16_43], %74 {strides = array<i32>} : memref<1x8x32xf32, #tpu.memory_space<vmem>>, vector<1x8x8xf32>,
    %c0_44 = arith.constant 0 : index
    %c0_45 = arith.constant 0 : index
    %c24 = arith.constant 24 : index
    %75 = vector.load %arg1[%c0_44, %c0_45, %c24] : memref<1x8x32xf32, #tpu.memory_space<vmem>>, vector<1x8x8xf32>
    %76 = vector.shape_cast %75 : vector<1x8x8xf32> to vector<8x8xf32>
    %77 = arith.truncf %76 : vector<8x8xf32> to vector<8x8xbf16>
    %c0_46 = arith.constant 0 : index
    %c0_47 = arith.constant 0 : index
    %c24_48 = arith.constant 24 : index
    %78 = vector.load %arg2[%c0_46, %c0_47, %c24_48] : memref<1x8x32xf32, #tpu.memory_space<vmem>>, vector<1x8x8xf32>
    %79 = vector.shape_cast %78 : vector<1x8x8xf32> to vector<8x8xf32>
    %80 = arith.truncf %79 : vector<8x8xf32> to vector<8x8xbf16>
    %c0_49 = arith.constant 0 : index
    %c0_50 = arith.constant 0 : index
    %c24_51 = arith.constant 24 : index
    %81 = vector.load %arg3[%c0_49, %c0_50, %c24_51] : memref<1x8x32xf32, #tpu.memory_space<vmem>>, vector<1x8x8xf32>
    %82 = vector.shape_cast %81 : vector<1x8x8xf32> to vector<8x8xf32>
    %83 = arith.truncf %82 : vector<8x8xf32> to vector<8x8xbf16>
    %cst_52 = arith.constant dense<0.000000e+00> : vector<8x8xf32>
    %84 = tpu.matmul %77, %80, %cst_52 {dimension_numbers = #tpu.dot_dimension_numbers<[1], [1], [0], [0], [0, 0, 1, 0], [], []>} : vector<8x8xbf16>, vector<8x8xbf16>, vector<8x8xf32> -> vector<8x8xf32>
    %cst_53 = arith.constant dense<0xFF800000> : vector<8xf32>
    %85 = vector.multi_reduction <maximumf>, %84, %cst_53 [1] : vector<8x8xf32> to vector<8xf32>
    %86 = vector.shape_cast %85 : vector<8xf32> to vector<8x1xf32>
    %87 = vector.broadcast %86 : vector<8x1xf32> to vector<8x8xf32>
    %88 = arith.subf %84, %87 : vector<8x8xf32>
    %89 = math.exp %88 : vector<8x8xf32>
    %cst_54 = arith.constant dense<0.000000e+00> : vector<8xf32>
    %90 = vector.multi_reduction <add>, %89, %cst_54 [1] : vector<8x8xf32> to vector<8xf32>
    %91 = vector.shape_cast %90 : vector<8xf32> to vector<8x1xf32>
    %92 = tpu.reciprocal %91 {approx = true} : vector<8x1xf32> -> vector<8x1xf32>
    %93 = vector.broadcast %92 : vector<8x1xf32> to vector<8x8xf32>
    %94 = arith.mulf %89, %93 : vector<8x8xf32>
    %95 = arith.truncf %94 : vector<8x8xf32> to vector<8x8xbf16>
    %cst_55 = arith.constant dense<0.000000e+00> : vector<8x8xf32>
    %96 = tpu.matmul %95, %83, %cst_55 {dimension_numbers = #tpu.dot_dimension_numbers<[1], [0], [0], [1], [0, 0, 1, 1], [], []>} : vector<8x8xbf16>, vector<8x8xbf16>, vector<8x8xf32> -> vector<8x8xf32>
    %c0_56 = arith.constant 0 : index
    %c0_57 = arith.constant 0 : index
    %c24_58 = arith.constant 24 : index
    %97 = vector.load %arg4[%c0_56, %c0_57, %c24_58] : memref<1x8x32xf32, #tpu.memory_space<vmem>>, vector<1x8x8xf32>
    %98 = vector.shape_cast %97 : vector<1x8x8xf32> to vector<8x8xf32>
    %99 = vector.shape_cast %96 : vector<8x8xf32> to vector<1x8x8xf32>
    tpu.vector_store %arg4[%c0_56, %c0_57, %c24_58], %99 {strides = array<i32>} : memref<1x8x32xf32, #tpu.memory_space<vmem>>, vector<1x8x8xf32>,
    return
  }
  func.func @transform_0(%arg0: i32) -> (i32, i32, i32) {
    %c0_i32 = arith.constant 0 : i32
    %c0_i32_0 = arith.constant 0 : i32
    %c0_i32_1 = arith.constant 0 : i32
    return %arg0, %c0_i32, %c0_i32_0 : i32, i32, i32
  }
  func.func @transform_1(%arg0: i32) -> (i32, i32, i32) {
    %c0_i32 = arith.constant 0 : i32
    %c0_i32_0 = arith.constant 0 : i32
    %c0_i32_1 = arith.constant 0 : i32
    return %arg0, %c0_i32, %c0_i32_0 : i32, i32, i32
  }
  func.func @transform_2(%arg0: i32) -> (i32, i32, i32) {
    %c0_i32 = arith.constant 0 : i32
    %c0_i32_0 = arith.constant 0 : i32
    %c0_i32_1 = arith.constant 0 : i32
    return %arg0, %c0_i32, %c0_i32_0 : i32, i32, i32
  }
  func.func @transform_3(%arg0: i32) -> (i32, i32, i32) {
    %c0_i32 = arith.constant 0 : i32
    %c0_i32_0 = arith.constant 0 : i32
    %c0_i32_1 = arith.constant 0 : i32
    return %arg0, %c0_i32, %c0_i32_0 : i32, i32, i32
  }
}

</mosaic_0001>

<llo_original>
// kernel: multi_headed_attention.9
$region0: #{multi_headed_attention.9}
  #allocation0 [shape = 'u32[]', space=smem, size = 0x4, offset = 0x4, fixed_abs, tag = 'smem constant byte address 0x4 - core index']
  #allocation1 [shape = 'u32[144,128]{1,0:T(1,128)}', space=vmem, size = 0x12000, scoped, tag = 'internal scratch']
  #allocation2 [shape = 'f32[16,32]{1,0:T(8,128)}', space=vmem, size = 0x2000, scoped, tag = 'scratch operand']
  %s0 = inlined_call_operand.vmem [shape: f32[16,32], index: 0, kind: input, shape index: {}]
  %s1 = inlined_call_operand.vmem [shape: bf16[32,32], index: 1, kind: input, shape index: {}]
  %s2 = inlined_call_operand.vmem [shape: f32[1,32], index: 2, kind: input, shape index: {}]
  %s3 = inlined_call_operand.hbm [shape: f32[16,32], index: 3, kind: output, shape index: {}]
  %s4 = sld [smem:[#allocation0]]
  $region30: #{multi_headed_attention.9} parent=0
    _
  %s6 = ssub.s32 1, %s4
  %s7 = scalar_select 0, %s6, %s4
  $region1: #{multi_headed_attention.9} parent=0
    #allocation3 [shape = 'u8[8192]{0}', space=vmem, size = 0x2000, scoped, tag = 'output window, operand 0, single buffered']
    #allocation4 [shape = 's32[1]{0}', space=sflag, size = 0x4, scoped, tag = 'scoped memory for multi_headed_attention.9']
    %8 = vsyncpa [#allocation4], 0
    // Predicated region
    $region2: #{multi_headed_attention.9} parent=1 // pred_check
      _
    $region3: #{multi_headed_attention.9} parent=1 // pred_check_branch
      %10 = sbr.rel (0) target = $region5
    $region4: #{multi_headed_attention.9} parent=1 // pred_region
      _
    $region5: #{multi_headed_attention.9} parent=1 // pred_fallthru
      _
    // Predicated region
    $region6: #{multi_headed_attention.9} parent=1 // pred_check
      _
    $region7: #{multi_headed_attention.9} parent=1 // pred_check_branch
      %12 = sbr.rel (0) target = $region9
    $region8: #{multi_headed_attention.9} parent=1 // pred_region
      _
    $region9: #{multi_headed_attention.9} parent=1 // pred_fallthru
      _
    // Predicated region
    $region10: #{multi_headed_attention.9} parent=1 // pred_check
      _
    $region11: #{multi_headed_attention.9} parent=1 // pred_check_branch
      %14 = sbr.rel (0) target = $region13
    $region12: #{multi_headed_attention.9} parent=1 // pred_region
      _
    $region13: #{multi_headed_attention.9} parent=1 // pred_fallthru
      _
    %p16 = scmp.eq.s32.totalorder 0, 0
    // Predicated region
    $region14: #{multi_headed_attention.9} parent=1 // pred_check
      %p17 = pneg %p16
    $region15: #{multi_headed_attention.9} parent=1 // pred_check_branch
      %19 = sbr.rel (%p17) target = $region17
    $region16: #{multi_headed_attention.9} parent=1 // pred_region
      %vm20 = vcmask 261120
      %21 = vst.msk [vmem:[#allocation2] sm:$0xff] %vm20, 0.0
      %22 = vst.msk [vmem:[#allocation2 + $0x8] sm:$0xff] %vm20, 0.0
    $region17: #{multi_headed_attention.9} parent=1 // pred_fallthru
      _
    %v23 = vld [vmem:[#allocation2] sm:$0xff]
    %v24 = vld [vmem:[#allocation2 + $0x8] sm:$0xff]
    %v25 = vld [vmem:[%s0] sm:$0xff]
    %v26 = vld [vmem:[%s0 + $0x8] sm:$0xff]
    %v27 = vpack.c.bf16 %v26, %v25
    %v28 = vld [vmem:[%s1] sm:$0xf]
    %v29 = vld [vmem:[%s1 + $0x4] sm:$0xf]
    %v30 = vld [vmem:[%s1 + $0x8] sm:$0xf]
    %v31 = vld [vmem:[%s1 + $0xc] sm:$0xf]
    %v36 = vunpack.c.l.b16 %v28
    %v37 = vunpack.c.l.b16 %v29
    %v38 = vunpack.c.l.b16 %v30
    %v39 = vunpack.c.l.b16 %v31
    %v40 = vpack.c.b16 %v37, %v36
    %v41 = vpack.c.b16 %v39, %v38
    %vm44 = vcmask 261120
    %v46 = vsel %vm44, %v27, 0
    %48 = vmatprep.subr.bf16.mxu0 0
    %49 = vmatpush1.bf16.msra.mxu0 %v40
    %50 = vmatprep.subr.bf16.mxu0 0
    %51 = vmatpush1.bf16.msra.mxu0 %v41
    %52 = vmatprep.subr.bf16.mxu0 0
    %53 = vmatpush1.bf16.msra.mxu0 0
    %54 = vmatprep.subr.bf16.mxu0 0
    %55 = vmatpush1.bf16.msra.mxu0 0
    %56 = vmatprep.subr.bf16.mxu0 0
    %57 = vmatpush1.bf16.msra.mxu0 0
    %58 = vmatprep.subr.bf16.mxu0 0
    %59 = vmatpush1.bf16.msra.mxu0 0
    %60 = vmatprep.subr.bf16.mxu0 0
    %61 = vmatpush1.bf16.msra.mxu0 0
    %62 = vmatprep.subr.bf16.mxu0 0
    %63 = vmatpush1.bf16.msra.mxu0 0
    %64 = vmatprep.subr.bf16.mxu0 0
    %65 = vmatpush1.bf16.msra.mxu0 0
    %66 = vmatprep.subr.bf16.mxu0 0
    %67 = vmatpush1.bf16.msra.mxu0 0
    %68 = vmatprep.subr.bf16.mxu0 0
    %69 = vmatpush1.bf16.msra.mxu0 0
    %70 = vmatprep.subr.bf16.mxu0 0
    %71 = vmatpush1.bf16.msra.mxu0 0
    %72 = vmatprep.subr.bf16.mxu0 0
    %73 = vmatpush1.bf16.msra.mxu0 0
    %74 = vmatprep.subr.bf16.mxu0 0
    %75 = vmatpush1.bf16.msra.mxu0 0
    %76 = vmatprep.subr.bf16.mxu0 0
    %77 = vmatpush1.bf16.msra.mxu0 0
    %78 = vmatprep.subr.bf16.mxu0 0
    %79 = vmatpush1.bf16.msra.mxu0 0
    %80 = vmatprep.mubr.bf16.mxu0 0
    %81 = vmatmul.mubr.bf16.gmra.mrb[0].mxu0 %v46
    %v82 = vpop.f32.mrb[0].mxu0
    %v83 = vadd.f32 0.0, %v82
    %v84 = vpop.f32.mrb[0].mxu0
    %v85 = vpop.f32.mrb[0].mxu0
    %v86 = vadd.f32 0.0, %v85
    %v87 = vpop.f32.mrb[0].mxu0
    %88 = vdwg.mxu0
    %v89 = vadd.f32 %v23, %v83
    %v90 = vadd.f32 %v24, %v86
    %91 = vst.msk [vmem:[#allocation2] sm:$0xff] %vm44, %v89
    %92 = vst.msk [vmem:[#allocation2 + $0x8] sm:$0xff] %vm44, %v90
    // Predicated region
    $region18: #{multi_headed_attention.9} parent=1 // pred_check
      %p93 = pneg %p16
    $region19: #{multi_headed_attention.9} parent=1 // pred_check_branch
      %95 = sbr.rel (%p93) target = $region21
    $region20: #{multi_headed_attention.9} parent=1 // pred_region
      %v96 = vld [vmem:[#allocation2] sm:$0xff]
      %v97 = vld [vmem:[#allocation2 + $0x8] sm:$0xff]
      %v98 = vld [vmem:[%s2] sm:$0x1]
      %v100 = vlaneseq
      %v101 = vshrl.u32 %v100, 7
      %v102 = vsub.s32 0, %v101
      %v103 = vrot.slane %v98, %v102
      %v105 = vadd.f32 %v96, %v103
      %v106 = vadd.f32 %v97, %v103
      %107 = vst.msk [vmem:[#allocation3] sm:$0xff] %vm44, %v105
      %108 = vst.msk [vmem:[#allocation3 + $0x8] sm:$0xff] %vm44, %v106
    $region21: #{multi_headed_attention.9} parent=1 // pred_fallthru
      _
    // Predicated region
    $region22: #{multi_headed_attention.9} parent=1 // pred_check
      _
    $region23: #{multi_headed_attention.9} parent=1 // pred_check_branch
      %110 = sbr.rel (0) target = $region25
    $region24: #{multi_headed_attention.9} parent=1 // pred_region
      %s112 = ssub.s32 256, 256
      %113 = vsyncadd [#allocation4], %s112
      %s114 = sshll.u32 [#allocation3], 4
      %s115 = int_to_ptr.vmem [resolvable:$true] %s114
      %120 = dma.vmem_to_hbm [thread:$0]  %s115, 256, %s3, [#allocation4], 128, 128, 8
    $region25: #{multi_headed_attention.9} parent=1 // pred_fallthru
      _
    // Predicated region
    $region26: #{multi_headed_attention.9} parent=1 // pred_check
      _
    $region27: #{multi_headed_attention.9} parent=1 // pred_check_branch
      %122 = sbr.rel (0) target = $region29
    $region28: #{multi_headed_attention.9} parent=1 // pred_region
      %123 = dma.done [#allocation4], 256
    $region29: #{multi_headed_attention.9} parent=1 // pred_fallthru
      _
    %124 = vsyncpa [#allocation4], 1

// kernel: multi_headed_attention.6
$region0: #{multi_headed_attention.6}
  #allocation0 [shape = 'u32[]', space=smem, size = 0x4, offset = 0x4, fixed_abs, tag = 'smem constant byte address 0x4 - core index']
  #allocation1 [shape = 'u32[144,128]{1,0:T(1,128)}', space=vmem, size = 0x12000, scoped, tag = 'internal scratch']
  #allocation2 [shape = 'f32[16,32]{1,0:T(8,128)}', space=vmem, size = 0x2000, scoped, tag = 'scratch operand']
  %s0 = inlined_call_operand.vmem [shape: f32[16,32], index: 0, kind: input, shape index: {}]
  %s1 = inlined_call_operand.vmem [shape: bf16[32,32], index: 1, kind: input, shape index: {}]
  %s2 = inlined_call_operand.vmem [shape: f32[1,32], index: 2, kind: input, shape index: {}]
  %s3 = inlined_call_operand.vmem [shape: f32[16,32], index: 3, kind: output, shape index: {}]
  %s4 = sld [smem:[#allocation0]]
  $region30: #{multi_headed_attention.6} parent=0
    _
  %s6 = ssub.s32 1, %s4
  %s7 = scalar_select 0, %s6, %s4
  // Predicated region
  $region2: #{multi_headed_attention.6} parent=0 // pred_check
    _
  $region3: #{multi_headed_attention.6} parent=0 // pred_check_branch
    %9 = sbr.rel (0) target = $region5
  $region4: #{multi_headed_attention.6} parent=0 // pred_region
    _
  $region5: #{multi_headed_attention.6} parent=0 // pred_fallthru
    _
  // Predicated region
  $region6: #{multi_headed_attention.6} parent=0 // pred_check
    _
  $region7: #{multi_headed_attention.6} parent=0 // pred_check_branch
    %11 = sbr.rel (0) target = $region9
  $region8: #{multi_headed_attention.6} parent=0 // pred_region
    _
  $region9: #{multi_headed_attention.6} parent=0 // pred_fallthru
    _
  // Predicated region
  $region10: #{multi_headed_attention.6} parent=0 // pred_check
    _
  $region11: #{multi_headed_attention.6} parent=0 // pred_check_branch
    %13 = sbr.rel (0) target = $region13
  $region12: #{multi_headed_attention.6} parent=0 // pred_region
    _
  $region13: #{multi_headed_attention.6} parent=0 // pred_fallthru
    _
  %p15 = scmp.eq.s32.totalorder 0, 0
  // Predicated region
  $region14: #{multi_headed_attention.6} parent=0 // pred_check
    %p16 = pneg %p15
  $region15: #{multi_headed_attention.6} parent=0 // pred_check_branch
    %18 = sbr.rel (%p16) target = $region17
  $region16: #{multi_headed_attention.6} parent=0 // pred_region
    %vm19 = vcmask 261120
    %20 = vst.msk [vmem:[#allocation2] sm:$0xff] %vm19, 0.0
    %21 = vst.msk [vmem:[#allocation2 + $0x8] sm:$0xff] %vm19, 0.0
  $region17: #{multi_headed_attention.6} parent=0 // pred_fallthru
    _
  %v22 = vld [vmem:[#allocation2] sm:$0xff]
  %v23 = vld [vmem:[#allocation2 + $0x8] sm:$0xff]
  %v24 = vld [vmem:[%s0] sm:$0xff]
  %v25 = vld [vmem:[%s0 + $0x8] sm:$0xff]
  %v26 = vpack.c.bf16 %v25, %v24
  %v27 = vld [vmem:[%s1] sm:$0xf]
  %v28 = vld [vmem:[%s1 + $0x4] sm:$0xf]
  %v29 = vld [vmem:[%s1 + $0x8] sm:$0xf]
  %v30 = vld [vmem:[%s1 + $0xc] sm:$0xf]
  %v35 = vunpack.c.l.b16 %v27
  %v36 = vunpack.c.l.b16 %v28
  %v37 = vunpack.c.l.b16 %v29
  %v38 = vunpack.c.l.b16 %v30
  %v39 = vpack.c.b16 %v36, %v35
  %v40 = vpack.c.b16 %v38, %v37
  %vm43 = vcmask 261120
  %v45 = vsel %vm43, %v26, 0
  %47 = vmatprep.subr.bf16.mxu0 0
  %48 = vmatpush1.bf16.msra.mxu0 %v39
  %49 = vmatprep.subr.bf16.mxu0 0
  %50 = vmatpush1.bf16.msra.mxu0 %v40
  %51 = vmatprep.subr.bf16.mxu0 0
  %52 = vmatpush1.bf16.msra.mxu0 0
  %53 = vmatprep.subr.bf16.mxu0 0
  %54 = vmatpush1.bf16.msra.mxu0 0
  %55 = vmatprep.subr.bf16.mxu0 0
  %56 = vmatpush1.bf16.msra.mxu0 0
  %57 = vmatprep.subr.bf16.mxu0 0
  %58 = vmatpush1.bf16.msra.mxu0 0
  %59 = vmatprep.subr.bf16.mxu0 0
  %60 = vmatpush1.bf16.msra.mxu0 0
  %61 = vmatprep.subr.bf16.mxu0 0
  %62 = vmatpush1.bf16.msra.mxu0 0
  %63 = vmatprep.subr.bf16.mxu0 0
  %64 = vmatpush1.bf16.msra.mxu0 0
  %65 = vmatprep.subr.bf16.mxu0 0
  %66 = vmatpush1.bf16.msra.mxu0 0
  %67 = vmatprep.subr.bf16.mxu0 0
  %68 = vmatpush1.bf16.msra.mxu0 0
  %69 = vmatprep.subr.bf16.mxu0 0
  %70 = vmatpush1.bf16.msra.mxu0 0
  %71 = vmatprep.subr.bf16.mxu0 0
  %72 = vmatpush1.bf16.msra.mxu0 0
  %73 = vmatprep.subr.bf16.mxu0 0
  %74 = vmatpush1.bf16.msra.mxu0 0
  %75 = vmatprep.subr.bf16.mxu0 0
  %76 = vmatpush1.bf16.msra.mxu0 0
  %77 = vmatprep.subr.bf16.mxu0 0
  %78 = vmatpush1.bf16.msra.mxu0 0
  %79 = vmatprep.mubr.bf16.mxu0 0
  %80 = vmatmul.mubr.bf16.gmra.mrb[0].mxu0 %v45
  %v81 = vpop.f32.mrb[0].mxu0
  %v82 = vadd.f32 0.0, %v81
  %v83 = vpop.f32.mrb[0].mxu0
  %v84 = vpop.f32.mrb[0].mxu0
  %v85 = vadd.f32 0.0, %v84
  %v86 = vpop.f32.mrb[0].mxu0
  %87 = vdwg.mxu0
  %v88 = vadd.f32 %v22, %v82
  %v89 = vadd.f32 %v23, %v85
  %90 = vst.msk [vmem:[#allocation2] sm:$0xff] %vm43, %v88
  %91 = vst.msk [vmem:[#allocation2 + $0x8] sm:$0xff] %vm43, %v89
  // Predicated region
  $region18: #{multi_headed_attention.6} parent=0 // pred_check
    %p92 = pneg %p15
  $region19: #{multi_headed_attention.6} parent=0 // pred_check_branch
    %94 = sbr.rel (%p92) target = $region21
  $region20: #{multi_headed_attention.6} parent=0 // pred_region
    %v95 = vld [vmem:[#allocation2] sm:$0xff]
    %v96 = vld [vmem:[#allocation2 + $0x8] sm:$0xff]
    %v97 = vld [vmem:[%s2] sm:$0x1]
    %v99 = vlaneseq
    %v100 = vshrl.u32 %v99, 7
    %v101 = vsub.s32 0, %v100
    %v102 = vrot.slane %v97, %v101
    %v104 = vadd.f32 %v95, %v102
    %v105 = vadd.f32 %v96, %v102
    %106 = vst.msk [vmem:[%s3] sm:$0xff] %vm43, %v104
    %107 = vst.msk [vmem:[%s3 + $0x8] sm:$0xff] %vm43, %v105
  $region21: #{multi_headed_attention.6} parent=0 // pred_fallthru
    _
  // Predicated region
  $region22: #{multi_headed_attention.6} parent=0 // pred_check
    _
  $region23: #{multi_headed_attention.6} parent=0 // pred_check_branch
    %109 = sbr.rel (0) target = $region25
  $region24: #{multi_headed_attention.6} parent=0 // pred_region
    _
  $region25: #{multi_headed_attention.6} parent=0 // pred_fallthru
    _
  // Predicated region
  $region26: #{multi_headed_attention.6} parent=0 // pred_check
    _
  $region27: #{multi_headed_attention.6} parent=0 // pred_check_branch
    %111 = sbr.rel (0) target = $region29
  $region28: #{multi_headed_attention.6} parent=0 // pred_region
    _
  $region29: #{multi_headed_attention.6} parent=0 // pred_fallthru
    _

// kernel: multi_headed_attention.8
$region0: #{multi_headed_attention.8}
  #allocation0 [shape = 'u32[]', space=smem, size = 0x4, offset = 0x4, fixed_abs, tag = 'smem constant byte address 0x4 - core index']
  #allocation1 [shape = 'u32[144,128]{1,0:T(1,128)}', space=vmem, size = 0x12000, scoped, tag = 'internal scratch']
  %s0 = inlined_call_operand.vmem [shape: f32[2,8,32], index: 0, kind: input, shape index: {}]
  %s1 = inlined_call_operand.vmem [shape: f32[2,8,32], index: 1, kind: input, shape index: {}]
  %s2 = inlined_call_operand.vmem [shape: f32[2,8,32], index: 2, kind: input, shape index: {}]
  %s3 = inlined_call_operand.vmem [shape: f32[2,8,32], index: 3, kind: output, shape index: {}]
  %s4 = sld [smem:[#allocation0]]
  $region45: #{multi_headed_attention.8} parent=0
    _
  %s6 = ssub.s32 1, %s4
  %s7 = scalar_select 0, %s6, %s4
  loop: start=0, step=1, limit=4
  $region2: #{multi_headed_attention.8} parent=0 // loop_pre_header
    _
  $region3: #{multi_headed_attention.8} parent=0 // loop_header
    %s9 = sphi 0, %s13
    %p10 = scmp.ge.s32.totalorder %s9, 4
    %s19 = sphi 0, %s21
    %s22 = sphi 0, %s19
    %s23 = sphi 0, %s22
    %s39 = sphi 0, %s23
    %s45 = sphi 0, %s47
    %s48 = sphi 0, %s45
    %s49 = sphi 0, %s48
    %s65 = sphi 0, %s49
    %s71 = sphi 0, %s73
    %s74 = sphi 0, %s71
    %s75 = sphi 0, %s74
    %s91 = sphi 0, %s75
    %s97 = sphi 0, %s99
    %s100 = sphi 0, %s97
    %s101 = sphi 0, %s100
    %s117 = sphi 0, %s101
  $region4: #{multi_headed_attention.8} parent=0 // loop_header_branch
    %12 = sbr.rel (%p10) target = $region8
  $region5: #{multi_headed_attention.8} parent=0 // loop_body
    %s14 = ssub.s32 %s9, 1
    %s15 = ssub.s32 %s9, 2
    %s16 = sadd.s32 %s9, 1
    %s17 = ssub.s32 %s9, %s16
    %p18 = scmp.eq.s32.totalorder %s17, 0
    %s20 = sadd.s32 %s19, 1
    %s21 = scalar_select %p18, %s19, %s20
    %p24 = pneg %p18
    %p25 = scmp.eq.s32.totalorder %s9, 1
    %p26 = por %p24, %p25
    %p27 = scmp.ne.s32.totalorder %s19, %s22
    %p28 = scmp.eq.s32.totalorder %s9, 0
    %p29 = por %p27, %p28
    %p30 = scmp.ne.s32.totalorder %s19, %s22
    %p31 = scmp.eq.s32.totalorder %s14, 1
    %p32 = por %p30, %p31
    %p33 = scmp.ne.s32.totalorder %s22, %s23
    %p34 = scmp.eq.s32.totalorder %s14, 0
    %p35 = por %p33, %p34
    %p36 = scmp.ne.s32.totalorder %s22, %s23
    %p37 = scmp.eq.s32.totalorder %s15, 1
    %p38 = por %p36, %p37
    %p40 = scmp.ne.s32.totalorder %s23, %s39
    %p41 = scmp.eq.s32.totalorder %s15, 0
    %p42 = por %p40, %p41
    %s43 = ssub.s32 %s9, %s16
    %p44 = scmp.eq.s32.totalorder %s43, 0
    %s46 = sadd.s32 %s45, 1
    %s47 = scalar_select %p44, %s45, %s46
    %p50 = pneg %p44
    %p51 = scmp.eq.s32.totalorder %s9, 1
    %p52 = por %p50, %p51
    %p53 = scmp.ne.s32.totalorder %s45, %s48
    %p54 = scmp.eq.s32.totalorder %s9, 0
    %p55 = por %p53, %p54
    %p56 = scmp.ne.s32.totalorder %s45, %s48
    %p57 = scmp.eq.s32.totalorder %s14, 1
    %p58 = por %p56, %p57
    %p59 = scmp.ne.s32.totalorder %s48, %s49
    %p60 = scmp.eq.s32.totalorder %s14, 0
    %p61 = por %p59, %p60
    %p62 = scmp.ne.s32.totalorder %s48, %s49
    %p63 = scmp.eq.s32.totalorder %s15, 1
    %p64 = por %p62, %p63
    %p66 = scmp.ne.s32.totalorder %s49, %s65
    %p67 = scmp.eq.s32.totalorder %s15, 0
    %p68 = por %p66, %p67
    %s69 = ssub.s32 %s9, %s16
    %p70 = scmp.eq.s32.totalorder %s69, 0
    %s72 = sadd.s32 %s71, 1
    %s73 = scalar_select %p70, %s71, %s72
    %p76 = pneg %p70
    %p77 = scmp.eq.s32.totalorder %s9, 1
    %p78 = por %p76, %p77
    %p79 = scmp.ne.s32.totalorder %s71, %s74
    %p80 = scmp.eq.s32.totalorder %s9, 0
    %p81 = por %p79, %p80
    %p82 = scmp.ne.s32.totalorder %s71, %s74
    %p83 = scmp.eq.s32.totalorder %s14, 1
    %p84 = por %p82, %p83
    %p85 = scmp.ne.s32.totalorder %s74, %s75
    %p86 = scmp.eq.s32.totalorder %s14, 0
    %p87 = por %p85, %p86
    %p88 = scmp.ne.s32.totalorder %s74, %s75
    %p89 = scmp.eq.s32.totalorder %s15, 1
    %p90 = por %p88, %p89
    %p92 = scmp.ne.s32.totalorder %s75, %s91
    %p93 = scmp.eq.s32.totalorder %s15, 0
    %p94 = por %p92, %p93
    %s95 = ssub.s32 %s9, %s16
    %p96 = scmp.eq.s32.totalorder %s95, 0
    %s98 = sadd.s32 %s97, 1
    %s99 = scalar_select %p96, %s97, %s98
    %p102 = pneg %p96
    %p103 = scmp.eq.s32.totalorder %s9, 1
    %p104 = por %p102, %p103
    %p105 = scmp.ne.s32.totalorder %s97, %s100
    %p106 = scmp.eq.s32.totalorder %s9, 0
    %p107 = por %p105, %p106
    %p108 = scmp.ne.s32.totalorder %s97, %s100
    %p109 = scmp.eq.s32.totalorder %s14, 1
    %p110 = por %p108, %p109
    %p111 = scmp.ne.s32.totalorder %s100, %s101
    %p112 = scmp.eq.s32.totalorder %s14, 0
    %p113 = por %p111, %p112
    %p114 = scmp.ne.s32.totalorder %s100, %s101
    %p115 = scmp.eq.s32.totalorder %s15, 1
    %p116 = por %p114, %p115
    %p118 = scmp.ne.s32.totalorder %s101, %s117
    %p119 = scmp.eq.s32.totalorder %s15, 0
    %p120 = por %p118, %p119
    %p121 = scmp.le.s32.totalorder 1, %s9
    %p122 = scmp.lt.s32.totalorder %s9, 3
    %p123 = pnand %p121, %p122
    %p124 = pneg %p123
    // Predicated region
    $region9: #{multi_headed_attention.8} parent=5 // pred_check
      _
    $region10: #{multi_headed_attention.8} parent=5 // pred_check_branch
      %126 = sbr.rel (%p123) target = $region12
    $region11: #{multi_headed_attention.8} parent=5 // pred_region
      %s127 = ssub.s32 %s9, 1
    $region12: #{multi_headed_attention.8} parent=5 // pred_fallthru
      _
    %p128 = scmp.lt.s32.totalorder %s9, 2
    // Predicated region
    $region13: #{multi_headed_attention.8} parent=5 // pred_check
      %p129 = pneg %p128
    $region14: #{multi_headed_attention.8} parent=5 // pred_check_branch
      %131 = sbr.rel (%p129) target = $region16
    $region15: #{multi_headed_attention.8} parent=5 // pred_region
      // Predicated region
      $region17: #{multi_headed_attention.8} parent=15 // pred_check
        %p132 = pneg %p29
      $region18: #{multi_headed_attention.8} parent=15 // pred_check_branch
        %134 = sbr.rel (%p132) target = $region20
      $region19: #{multi_headed_attention.8} parent=15 // pred_region
        %p135 = scmp.lt.s32.totalorder %s9, 1
        %s136 = scalar_select %p135, %s9, 1
        %s137 = smul.addr %s136, 8
        %s138 = scalar_lea.vmem %s0, %s137
      $region20: #{multi_headed_attention.8} parent=15 // pred_fallthru
        _
      // Predicated region
      $region21: #{multi_headed_attention.8} parent=15 // pred_check
        %p139 = pneg %p55
      $region22: #{multi_headed_attention.8} parent=15 // pred_check_branch
        %141 = sbr.rel (%p139) target = $region24
      $region23: #{multi_headed_attention.8} parent=15 // pred_region
        %p142 = scmp.lt.s32.totalorder %s9, 1
        %s143 = scalar_select %p142, %s9, 1
        %s144 = smul.addr %s143, 8
        %s145 = scalar_lea.vmem %s1, %s144
      $region24: #{multi_headed_attention.8} parent=15 // pred_fallthru
        _
      // Predicated region
      $region25: #{multi_headed_attention.8} parent=15 // pred_check
        %p146 = pneg %p81
      $region26: #{multi_headed_attention.8} parent=15 // pred_check_branch
        %148 = sbr.rel (%p146) target = $region28
      $region27: #{multi_headed_attention.8} parent=15 // pred_region
        %p149 = scmp.lt.s32.totalorder %s9, 1
        %s150 = scalar_select %p149, %s9, 1
        %s151 = smul.addr %s150, 8
        %s152 = scalar_lea.vmem %s2, %s151
      $region28: #{multi_headed_attention.8} parent=15 // pred_fallthru
        _
    $region16: #{multi_headed_attention.8} parent=5 // pred_fallthru
      _
    %p153 = scmp.le.s32.totalorder 1, %s9
    %p154 = scmp.lt.s32.totalorder %s9, 3
    %p155 = pnand %p153, %p154
    %p156 = pneg %p155
    // Predicated region
    $region29: #{multi_headed_attention.8} parent=5 // pred_check
      _
    $region30: #{multi_headed_attention.8} parent=5 // pred_check_branch
      %158 = sbr.rel (%p155) target = $region32
    $region31: #{multi_headed_attention.8} parent=5 // pred_region
      %s159 = ssub.s32 %s9, 1
      %p160 = scmp.lt.s32.totalorder %s14, 1
      %s161 = scalar_select %p160, %s14, 1
      %s162 = smul.addr %s161, 8
      %s163 = scalar_lea.vmem %s0, %s162
      %p164 = pneg %p35
      %p165 = pneg %p32
      %p166 = scmp.lt.s32.totalorder %s14, 1
      %s167 = scalar_select %p166, %s14, 1
      %s168 = smul.addr %s167, 8
      %s169 = scalar_lea.vmem %s1, %s168
      %p170 = pneg %p61
      %p171 = pneg %p58
      %p172 = scmp.lt.s32.totalorder %s14, 1
      %s173 = scalar_select %p172, %s14, 1
      %s174 = smul.addr %s173, 8
      %s175 = scalar_lea.vmem %s2, %s174
      %p176 = pneg %p87
      %p177 = pneg %p84
      %p178 = pneg %p113
      %p179 = pneg %p110
      %p180 = scmp.lt.s32.totalorder %s14, 1
      %s181 = scalar_select %p180, %s14, 1
      %s182 = smul.addr %s181, 8
      %s183 = scalar_lea.vmem %s3, %s182
      %p184 = scmp.lt.s32.totalorder %s14, 1
      %s185 = scalar_select %p184, %s14, 1
      %s186 = smul.addr %s185, 8
      %s187 = scalar_lea.vmem %s0, %s186
      %p188 = scmp.lt.s32.totalorder %s14, 1
      %s189 = scalar_select %p188, %s14, 1
      %s190 = smul.addr %s189, 8
      %s191 = scalar_lea.vmem %s1, %s190
      %p192 = scmp.lt.s32.totalorder %s14, 1
      %s193 = scalar_select %p192, %s14, 1
      %s194 = smul.addr %s193, 8
      %s195 = scalar_lea.vmem %s2, %s194
      %p196 = scmp.lt.s32.totalorder %s14, 1
      %s197 = scalar_select %p196, %s14, 1
      %s198 = smul.addr %s197, 8
      %s199 = scalar_lea.vmem %s3, %s198
      %v201 = vld [vmem:[%s187] sm:$0xff]
      %v202 = vpack.c.bf16 %v201, %v201
      %v203 = vld [vmem:[%s191] sm:$0xff]
      %v204 = vpack.c.bf16 %v203, %v203
      %v205 = vld [vmem:[%s195] sm:$0xff]
      %v206 = vpack.c.bf16 %v205, %v205
      %vm207 = vcmask 64512
      %v209 = vsel %vm207, %v202, 0
      %v212 = vsel %vm207, %v204, 0
      %214 = vmatprep.subr.bf16.mxu0 0
      %215 = vmatpush1.bf16.xpose.msra.mxu0 %v212
      %216 = vmatprep.subr.bf16.mxu0 0
      %217 = vmatpush1.bf16.xpose.msra.mxu0 0
      %218 = vmatprep.subr.bf16.mxu0 0
      %219 = vmatpush1.bf16.xpose.msra.mxu0 0
      %220 = vmatprep.subr.bf16.mxu0 0
      %221 = vmatpush1.bf16.xpose.msra.mxu0 0
      %222 = vmatprep.subr.bf16.mxu0 0
      %223 = vmatpush1.bf16.xpose.msra.mxu0 0
      %224 = vmatprep.subr.bf16.mxu0 0
      %225 = vmatpush1.bf16.xpose.msra.mxu0 0
      %226 = vmatprep.subr.bf16.mxu0 0
      %227 = vmatpush1.bf16.xpose.msra.mxu0 0
      %228 = vmatprep.subr.bf16.mxu0 0
      %229 = vmatpush1.bf16.xpose.msra.mxu0 0
      %230 = vmatprep.subr.bf16.mxu0 0
      %231 = vmatpush1.bf16.xpose.msra.mxu0 0
      %232 = vmatprep.subr.bf16.mxu0 0
      %233 = vmatpush1.bf16.xpose.msra.mxu0 0
      %234 = vmatprep.subr.bf16.mxu0 0
      %235 = vmatpush1.bf16.xpose.msra.mxu0 0
      %236 = vmatprep.subr.bf16.mxu0 0
      %237 = vmatpush1.bf16.xpose.msra.mxu0 0
      %238 = vmatprep.subr.bf16.mxu0 0
      %239 = vmatpush1.bf16.xpose.msra.mxu0 0
      %240 = vmatprep.subr.bf16.mxu0 0
      %241 = vmatpush1.bf16.xpose.msra.mxu0 0
      %242 = vmatprep.subr.bf16.mxu0 0
      %243 = vmatpush1.bf16.xpose.msra.mxu0 0
      %244 = vmatprep.subr.bf16.mxu0 0
      %245 = vmatpush1.bf16.xpose.msra.mxu0 0
      %246 = vmatprep.mubr.bf16.mxu0 0
      %247 = vmatmul.mubr.bf16.gmra.mrb[0].mxu0 %v209
      %v248 = vpop.f32.mrb[0].mxu0
      %v249 = vadd.f32 0.0, %v248
      %v250 = vpop.f32.mrb[0].mxu0
      %v251 = vpop.f32.mrb[0].mxu0
      %v252 = vpop.f32.mrb[0].mxu0
      %253 = vdwg.mxu0
      %v254 = vsel %vm207, %v249, -inf
      %255 = vmax.xlane.f32.xlu0 %v254
      %v256 = vpop.xlane.xlu0 %255
      %v257 = vsub.f32 %v249, %v256
      %v258 = vmul.f32 %v257, 1.442695
      %v259 = vpow.pop %v258
      %v260 = vsel %vm207, %v259, 0.0
      %261 = vadd.xlane.f32.xlu0 %v260
      %v262 = vpop.xlane.xlu0 %261
      %v263 = vrcp.pop %v262
      %v264 = vmul.f32 %v259, %v263
      %v265 = vpack.c.bf16 %v264, %v264
      %v267 = vsel %vm207, %v265, 0
      %vm269 = vcmask 1043456
      %v271 = vsel %vm269, %v206, 0
      %273 = vmatprep.subr.bf16.mxu0 0
      %274 = vmatpush1.bf16.msra.mxu0 %v271
      %275 = vmatprep.subr.bf16.mxu0 0
      %276 = vmatpush1.bf16.msra.mxu0 0
      %277 = vmatprep.subr.bf16.mxu0 0
      %278 = vmatpush1.bf16.msra.mxu0 0
      %279 = vmatprep.subr.bf16.mxu0 0
      %280 = vmatpush1.bf16.msra.mxu0 0
      %281 = vmatprep.subr.bf16.mxu0 0
      %282 = vmatpush1.bf16.msra.mxu0 0
      %283 = vmatprep.subr.bf16.mxu0 0
      %284 = vmatpush1.bf16.msra.mxu0 0
      %285 = vmatprep.subr.bf16.mxu0 0
      %286 = vmatpush1.bf16.msra.mxu0 0
      %287 = vmatprep.subr.bf16.mxu0 0
      %288 = vmatpush1.bf16.msra.mxu0 0
      %289 = vmatprep.subr.bf16.mxu0 0
      %290 = vmatpush1.bf16.msra.mxu0 0
      %291 = vmatprep.subr.bf16.mxu0 0
      %292 = vmatpush1.bf16.msra.mxu0 0
      %293 = vmatprep.subr.bf16.mxu0 0
      %294 = vmatpush1.bf16.msra.mxu0 0
      %295 = vmatprep.subr.bf16.mxu0 0
      %296 = vmatpush1.bf16.msra.mxu0 0
      %297 = vmatprep.subr.bf16.mxu0 0
      %298 = vmatpush1.bf16.msra.mxu0 0
      %299 = vmatprep.subr.bf16.mxu0 0
      %300 = vmatpush1.bf16.msra.mxu0 0
      %301 = vmatprep.subr.bf16.mxu0 0
      %302 = vmatpush1.bf16.msra.mxu0 0
      %303 = vmatprep.subr.bf16.mxu0 0
      %304 = vmatpush1.bf16.msra.mxu0 0
      %305 = vmatprep.mubr.bf16.mxu0 0
      %306 = vmatmul.mubr.bf16.gmra.mrb[0].mxu0 %v267
      %v307 = vpop.f32.mrb[0].mxu0
      %v308 = vadd.f32 0.0, %v307
      %v309 = vpop.f32.mrb[0].mxu0
      %v310 = vpop.f32.mrb[0].mxu0
      %v311 = vpop.f32.mrb[0].mxu0
      %312 = vdwg.mxu0
      %313 = vst.msk [vmem:[%s199] sm:$0xff] %vm207, %v308
      %v314 = vld [vmem:[%s187] sm:$0xff]
      %v315 = vpack.c.bf16 %v314, %v314
      %v316 = vld [vmem:[%s191] sm:$0xff]
      %v317 = vpack.c.bf16 %v316, %v316
      %v318 = vld [vmem:[%s195] sm:$0xff]
      %v319 = vpack.c.bf16 %v318, %v318
      %321 = vrot.lane.b32.xlu0 %v315, 120
      %v322 = vpop.permute.xlu0 %321
      %324 = vrot.lane.b32.xlu0 %v317, 120
      %v325 = vpop.permute.xlu0 %324
      %v327 = vsel %vm207, %v322, 0
      %v330 = vsel %vm207, %v325, 0
      %332 = vmatprep.subr.bf16.mxu0 0
      %333 = vmatpush1.bf16.xpose.msra.mxu0 %v330
      %334 = vmatprep.subr.bf16.mxu0 0
      %335 = vmatpush1.bf16.xpose.msra.mxu0 0
      %336 = vmatprep.subr.bf16.mxu0 0
      %337 = vmatpush1.bf16.xpose.msra.mxu0 0
      %338 = vmatprep.subr.bf16.mxu0 0
      %339 = vmatpush1.bf16.xpose.msra.mxu0 0
      %340 = vmatprep.subr.bf16.mxu0 0
      %341 = vmatpush1.bf16.xpose.msra.mxu0 0
      %342 = vmatprep.subr.bf16.mxu0 0
      %343 = vmatpush1.bf16.xpose.msra.mxu0 0
      %344 = vmatprep.subr.bf16.mxu0 0
      %345 = vmatpush1.bf16.xpose.msra.mxu0 0
      %346 = vmatprep.subr.bf16.mxu0 0
      %347 = vmatpush1.bf16.xpose.msra.mxu0 0
      %348 = vmatprep.subr.bf16.mxu0 0
      %349 = vmatpush1.bf16.xpose.msra.mxu0 0
      %350 = vmatprep.subr.bf16.mxu0 0
      %351 = vmatpush1.bf16.xpose.msra.mxu0 0
      %352 = vmatprep.subr.bf16.mxu0 0
      %353 = vmatpush1.bf16.xpose.msra.mxu0 0
      %354 = vmatprep.subr.bf16.mxu0 0
      %355 = vmatpush1.bf16.xpose.msra.mxu0 0
      %356 = vmatprep.subr.bf16.mxu0 0
      %357 = vmatpush1.bf16.xpose.msra.mxu0 0
      %358 = vmatprep.subr.bf16.mxu0 0
      %359 = vmatpush1.bf16.xpose.msra.mxu0 0
      %360 = vmatprep.subr.bf16.mxu0 0
      %361 = vmatpush1.bf16.xpose.msra.mxu0 0
      %362 = vmatprep.subr.bf16.mxu0 0
      %363 = vmatpush1.bf16.xpose.msra.mxu0 0
      %364 = vmatprep.mubr.bf16.mxu0 0
      %365 = vmatmul.mubr.bf16.gmra.mrb[0].mxu0 %v327
      %v366 = vpop.f32.mrb[0].mxu0
      %v367 = vadd.f32 0.0, %v366
      %v368 = vpop.f32.mrb[0].mxu0
      %v369 = vpop.f32.mrb[0].mxu0
      %v370 = vpop.f32.mrb[0].mxu0
      %371 = vdwg.mxu0
      %v372 = vsel %vm207, %v367, -inf
      %373 = vmax.xlane.f32.xlu0 %v372
      %v374 = vpop.xlane.xlu0 %373
      %v375 = vsub.f32 %v367, %v374
      %v376 = vmul.f32 %v375, 1.442695
      %v377 = vpow.pop %v376
      %v378 = vsel %vm207, %v377, 0.0
      %379 = vadd.xlane.f32.xlu0 %v378
      %v380 = vpop.xlane.xlu0 %379
      %v381 = vrcp.pop %v380
      %v382 = vmul.f32 %v377, %v381
      %v383 = vpack.c.bf16 %v382, %v382
      %385 = vrot.lane.b32.xlu0 %v319, 120
      %v386 = vpop.permute.xlu0 %385
      %v388 = vsel %vm207, %v383, 0
      %v391 = vsel %vm269, %v386, 0
      %393 = vmatprep.subr.bf16.mxu0 0
      %394 = vmatpush1.bf16.msra.mxu0 %v391
      %395 = vmatprep.subr.bf16.mxu0 0
      %396 = vmatpush1.bf16.msra.mxu0 0
      %397 = vmatprep.subr.bf16.mxu0 0
      %398 = vmatpush1.bf16.msra.mxu0 0
      %399 = vmatprep.subr.bf16.mxu0 0
      %400 = vmatpush1.bf16.msra.mxu0 0
      %401 = vmatprep.subr.bf16.mxu0 0
      %402 = vmatpush1.bf16.msra.mxu0 0
      %403 = vmatprep.subr.bf16.mxu0 0
      %404 = vmatpush1.bf16.msra.mxu0 0
      %405 = vmatprep.subr.bf16.mxu0 0
      %406 = vmatpush1.bf16.msra.mxu0 0
      %407 = vmatprep.subr.bf16.mxu0 0
      %408 = vmatpush1.bf16.msra.mxu0 0
      %409 = vmatprep.subr.bf16.mxu0 0
      %410 = vmatpush1.bf16.msra.mxu0 0
      %411 = vmatprep.subr.bf16.mxu0 0
      %412 = vmatpush1.bf16.msra.mxu0 0
      %413 = vmatprep.subr.bf16.mxu0 0
      %414 = vmatpush1.bf16.msra.mxu0 0
      %415 = vmatprep.subr.bf16.mxu0 0
      %416 = vmatpush1.bf16.msra.mxu0 0
      %417 = vmatprep.subr.bf16.mxu0 0
      %418 = vmatpush1.bf16.msra.mxu0 0
      %419 = vmatprep.subr.bf16.mxu0 0
      %420 = vmatpush1.bf16.msra.mxu0 0
      %421 = vmatprep.subr.bf16.mxu0 0
      %422 = vmatpush1.bf16.msra.mxu0 0
      %423 = vmatprep.subr.bf16.mxu0 0
      %424 = vmatpush1.bf16.msra.mxu0 0
      %425 = vmatprep.mubr.bf16.mxu0 0
      %426 = vmatmul.mubr.bf16.gmra.mrb[0].mxu0 %v388
      %v427 = vpop.f32.mrb[0].mxu0
      %v428 = vadd.f32 0.0, %v427
      %v429 = vpop.f32.mrb[0].mxu0
      %v430 = vpop.f32.mrb[0].mxu0
      %v431 = vpop.f32.mrb[0].mxu0
      %432 = vdwg.mxu0
      %434 = vrot.lane.b32.xlu0 %v428, 8
      %v435 = vpop.permute.xlu0 %434
      %vm437 = vcmask 130112
      %438 = vst.msk [vmem:[%s199] sm:$0xff] %vm437, %v435
      %v439 = vld [vmem:[%s187] sm:$0xff]
      %v440 = vpack.c.bf16 %v439, %v439
      %v441 = vld [vmem:[%s191] sm:$0xff]
      %v442 = vpack.c.bf16 %v441, %v441
      %v443 = vld [vmem:[%s195] sm:$0xff]
      %v444 = vpack.c.bf16 %v443, %v443
      %446 = vrot.lane.b32.xlu0 %v440, 112
      %v447 = vpop.permute.xlu0 %446
      %449 = vrot.lane.b32.xlu0 %v442, 112
      %v450 = vpop.permute.xlu0 %449
      %v452 = vsel %vm207, %v447, 0
      %v455 = vsel %vm207, %v450, 0
      %457 = vmatprep.subr.bf16.mxu0 0
      %458 = vmatpush1.bf16.xpose.msra.mxu0 %v455
      %459 = vmatprep.subr.bf16.mxu0 0
      %460 = vmatpush1.bf16.xpose.msra.mxu0 0
      %461 = vmatprep.subr.bf16.mxu0 0
      %462 = vmatpush1.bf16.xpose.msra.mxu0 0
      %463 = vmatprep.subr.bf16.mxu0 0
      %464 = vmatpush1.bf16.xpose.msra.mxu0 0
      %465 = vmatprep.subr.bf16.mxu0 0
      %466 = vmatpush1.bf16.xpose.msra.mxu0 0
      %467 = vmatprep.subr.bf16.mxu0 0
      %468 = vmatpush1.bf16.xpose.msra.mxu0 0
      %469 = vmatprep.subr.bf16.mxu0 0
      %470 = vmatpush1.bf16.xpose.msra.mxu0 0
      %471 = vmatprep.subr.bf16.mxu0 0
      %472 = vmatpush1.bf16.xpose.msra.mxu0 0
      %473 = vmatprep.subr.bf16.mxu0 0
      %474 = vmatpush1.bf16.xpose.msra.mxu0 0
      %475 = vmatprep.subr.bf16.mxu0 0
      %476 = vmatpush1.bf16.xpose.msra.mxu0 0
      %477 = vmatprep.subr.bf16.mxu0 0
      %478 = vmatpush1.bf16.xpose.msra.mxu0 0
      %479 = vmatprep.subr.bf16.mxu0 0
      %480 = vmatpush1.bf16.xpose.msra.mxu0 0
      %481 = vmatprep.subr.bf16.mxu0 0
      %482 = vmatpush1.bf16.xpose.msra.mxu0 0
      %483 = vmatprep.subr.bf16.mxu0 0
      %484 = vmatpush1.bf16.xpose.msra.mxu0 0
      %485 = vmatprep.subr.bf16.mxu0 0
      %486 = vmatpush1.bf16.xpose.msra.mxu0 0
      %487 = vmatprep.subr.bf16.mxu0 0
      %488 = vmatpush1.bf16.xpose.msra.mxu0 0
      %489 = vmatprep.mubr.bf16.mxu0 0
      %490 = vmatmul.mubr.bf16.gmra.mrb[0].mxu0 %v452
      %v491 = vpop.f32.mrb[0].mxu0
      %v492 = vadd.f32 0.0, %v491
      %v493 = vpop.f32.mrb[0].mxu0
      %v494 = vpop.f32.mrb[0].mxu0
      %v495 = vpop.f32.mrb[0].mxu0
      %496 = vdwg.mxu0
      %v497 = vsel %vm207, %v492, -inf
      %498 = vmax.xlane.f32.xlu0 %v497
      %v499 = vpop.xlane.xlu0 %498
      %v500 = vsub.f32 %v492, %v499
      %v501 = vmul.f32 %v500, 1.442695
      %v502 = vpow.pop %v501
      %v503 = vsel %vm207, %v502, 0.0
      %504 = vadd.xlane.f32.xlu0 %v503
      %v505 = vpop.xlane.xlu0 %504
      %v506 = vrcp.pop %v505
      %v507 = vmul.f32 %v502, %v506
      %v508 = vpack.c.bf16 %v507, %v507
      %510 = vrot.lane.b32.xlu0 %v444, 112
      %v511 = vpop.permute.xlu0 %510
      %v513 = vsel %vm207, %v508, 0
      %v516 = vsel %vm269, %v511, 0
      %518 = vmatprep.subr.bf16.mxu0 0
      %519 = vmatpush1.bf16.msra.mxu0 %v516
      %520 = vmatprep.subr.bf16.mxu0 0
      %521 = vmatpush1.bf16.msra.mxu0 0
      %522 = vmatprep.subr.bf16.mxu0 0
      %523 = vmatpush1.bf16.msra.mxu0 0
      %524 = vmatprep.subr.bf16.mxu0 0
      %525 = vmatpush1.bf16.msra.mxu0 0
      %526 = vmatprep.subr.bf16.mxu0 0
      %527 = vmatpush1.bf16.msra.mxu0 0
      %528 = vmatprep.subr.bf16.mxu0 0
      %529 = vmatpush1.bf16.msra.mxu0 0
      %530 = vmatprep.subr.bf16.mxu0 0
      %531 = vmatpush1.bf16.msra.mxu0 0
      %532 = vmatprep.subr.bf16.mxu0 0
      %533 = vmatpush1.bf16.msra.mxu0 0
      %534 = vmatprep.subr.bf16.mxu0 0
      %535 = vmatpush1.bf16.msra.mxu0 0
      %536 = vmatprep.subr.bf16.mxu0 0
      %537 = vmatpush1.bf16.msra.mxu0 0
      %538 = vmatprep.subr.bf16.mxu0 0
      %539 = vmatpush1.bf16.msra.mxu0 0
      %540 = vmatprep.subr.bf16.mxu0 0
      %541 = vmatpush1.bf16.msra.mxu0 0
      %542 = vmatprep.subr.bf16.mxu0 0
      %543 = vmatpush1.bf16.msra.mxu0 0
      %544 = vmatprep.subr.bf16.mxu0 0
      %545 = vmatpush1.bf16.msra.mxu0 0
      %546 = vmatprep.subr.bf16.mxu0 0
      %547 = vmatpush1.bf16.msra.mxu0 0
      %548 = vmatprep.subr.bf16.mxu0 0
      %549 = vmatpush1.bf16.msra.mxu0 0
      %550 = vmatprep.mubr.bf16.mxu0 0
      %551 = vmatmul.mubr.bf16.gmra.mrb[0].mxu0 %v513
      %v552 = vpop.f32.mrb[0].mxu0
      %v553 = vadd.f32 0.0, %v552
      %v554 = vpop.f32.mrb[0].mxu0
      %v555 = vpop.f32.mrb[0].mxu0
      %v556 = vpop.f32.mrb[0].mxu0
      %557 = vdwg.mxu0
      %559 = vrot.lane.b32.xlu0 %v553, 16
      %v560 = vpop.permute.xlu0 %559
      %vm562 = vcmask 195712
      %563 = vst.msk [vmem:[%s199] sm:$0xff] %vm562, %v560
      %v564 = vld [vmem:[%s187] sm:$0xff]
      %v565 = vpack.c.bf16 %v564, %v564
      %v566 = vld [vmem:[%s191] sm:$0xff]
      %v567 = vpack.c.bf16 %v566, %v566
      %v568 = vld [vmem:[%s195] sm:$0xff]
      %v569 = vpack.c.bf16 %v568, %v568
      %571 = vrot.lane.b32.xlu0 %v565, 104
      %v572 = vpop.permute.xlu0 %571
      %574 = vrot.lane.b32.xlu0 %v567, 104
      %v575 = vpop.permute.xlu0 %574
      %v577 = vsel %vm207, %v572, 0
      %v580 = vsel %vm207, %v575, 0
      %582 = vmatprep.subr.bf16.mxu0 0
      %583 = vmatpush1.bf16.xpose.msra.mxu0 %v580
      %584 = vmatprep.subr.bf16.mxu0 0
      %585 = vmatpush1.bf16.xpose.msra.mxu0 0
      %586 = vmatprep.subr.bf16.mxu0 0
      %587 = vmatpush1.bf16.xpose.msra.mxu0 0
      %588 = vmatprep.subr.bf16.mxu0 0
      %589 = vmatpush1.bf16.xpose.msra.mxu0 0
      %590 = vmatprep.subr.bf16.mxu0 0
      %591 = vmatpush1.bf16.xpose.msra.mxu0 0
      %592 = vmatprep.subr.bf16.mxu0 0
      %593 = vmatpush1.bf16.xpose.msra.mxu0 0
      %594 = vmatprep.subr.bf16.mxu0 0
      %595 = vmatpush1.bf16.xpose.msra.mxu0 0
      %596 = vmatprep.subr.bf16.mxu0 0
      %597 = vmatpush1.bf16.xpose.msra.mxu0 0
      %598 = vmatprep.subr.bf16.mxu0 0
      %599 = vmatpush1.bf16.xpose.msra.mxu0 0
      %600 = vmatprep.subr.bf16.mxu0 0
      %601 = vmatpush1.bf16.xpose.msra.mxu0 0
      %602 = vmatprep.subr.bf16.mxu0 0
      %603 = vmatpush1.bf16.xpose.msra.mxu0 0
      %604 = vmatprep.subr.bf16.mxu0 0
      %605 = vmatpush1.bf16.xpose.msra.mxu0 0
      %606 = vmatprep.subr.bf16.mxu0 0
      %607 = vmatpush1.bf16.xpose.msra.mxu0 0
      %608 = vmatprep.subr.bf16.mxu0 0
      %609 = vmatpush1.bf16.xpose.msra.mxu0 0
      %610 = vmatprep.subr.bf16.mxu0 0
      %611 = vmatpush1.bf16.xpose.msra.mxu0 0
      %612 = vmatprep.subr.bf16.mxu0 0
      %613 = vmatpush1.bf16.xpose.msra.mxu0 0
      %614 = vmatprep.mubr.bf16.mxu0 0
      %615 = vmatmul.mubr.bf16.gmra.mrb[0].mxu0 %v577
      %v616 = vpop.f32.mrb[0].mxu0
      %v617 = vadd.f32 0.0, %v616
      %v618 = vpop.f32.mrb[0].mxu0
      %v619 = vpop.f32.mrb[0].mxu0
      %v620 = vpop.f32.mrb[0].mxu0
      %621 = vdwg.mxu0
      %v622 = vsel %vm207, %v617, -inf
      %623 = vmax.xlane.f32.xlu0 %v622
      %v624 = vpop.xlane.xlu0 %623
      %v625 = vsub.f32 %v617, %v624
      %v626 = vmul.f32 %v625, 1.442695
      %v627 = vpow.pop %v626
      %v628 = vsel %vm207, %v627, 0.0
      %629 = vadd.xlane.f32.xlu0 %v628
      %v630 = vpop.xlane.xlu0 %629
      %v631 = vrcp.pop %v630
      %v632 = vmul.f32 %v627, %v631
      %v633 = vpack.c.bf16 %v632, %v632
      %635 = vrot.lane.b32.xlu0 %v569, 104
      %v636 = vpop.permute.xlu0 %635
      %v638 = vsel %vm207, %v633, 0
      %v641 = vsel %vm269, %v636, 0
      %643 = vmatprep.subr.bf16.mxu0 0
      %644 = vmatpush1.bf16.msra.mxu0 %v641
      %645 = vmatprep.subr.bf16.mxu0 0
      %646 = vmatpush1.bf16.msra.mxu0 0
      %647 = vmatprep.subr.bf16.mxu0 0
      %648 = vmatpush1.bf16.msra.mxu0 0
      %649 = vmatprep.subr.bf16.mxu0 0
      %650 = vmatpush1.bf16.msra.mxu0 0
      %651 = vmatprep.subr.bf16.mxu0 0
      %652 = vmatpush1.bf16.msra.mxu0 0
      %653 = vmatprep.subr.bf16.mxu0 0
      %654 = vmatpush1.bf16.msra.mxu0 0
      %655 = vmatprep.subr.bf16.mxu0 0
      %656 = vmatpush1.bf16.msra.mxu0 0
      %657 = vmatprep.subr.bf16.mxu0 0
      %658 = vmatpush1.bf16.msra.mxu0 0
      %659 = vmatprep.subr.bf16.mxu0 0
      %660 = vmatpush1.bf16.msra.mxu0 0
      %661 = vmatprep.subr.bf16.mxu0 0
      %662 = vmatpush1.bf16.msra.mxu0 0
      %663 = vmatprep.subr.bf16.mxu0 0
      %664 = vmatpush1.bf16.msra.mxu0 0
      %665 = vmatprep.subr.bf16.mxu0 0
      %666 = vmatpush1.bf16.msra.mxu0 0
      %667 = vmatprep.subr.bf16.mxu0 0
      %668 = vmatpush1.bf16.msra.mxu0 0
      %669 = vmatprep.subr.bf16.mxu0 0
      %670 = vmatpush1.bf16.msra.mxu0 0
      %671 = vmatprep.subr.bf16.mxu0 0
      %672 = vmatpush1.bf16.msra.mxu0 0
      %673 = vmatprep.subr.bf16.mxu0 0
      %674 = vmatpush1.bf16.msra.mxu0 0
      %675 = vmatprep.mubr.bf16.mxu0 0
      %676 = vmatmul.mubr.bf16.gmra.mrb[0].mxu0 %v638
      %v677 = vpop.f32.mrb[0].mxu0
      %v678 = vadd.f32 0.0, %v677
      %v679 = vpop.f32.mrb[0].mxu0
      %v680 = vpop.f32.mrb[0].mxu0
      %v681 = vpop.f32.mrb[0].mxu0
      %682 = vdwg.mxu0
      %684 = vrot.lane.b32.xlu0 %v678, 24
      %v685 = vpop.permute.xlu0 %684
      %vm687 = vcmask 261312
      %688 = vst.msk [vmem:[%s199] sm:$0xff] %vm687, %v685
      %p689 = scmp.lt.s32.totalorder %s14, 1
      %s690 = scalar_select %p689, %s14, 1
      %s691 = smul.addr %s690, 8
      %s692 = scalar_lea.vmem %s3, %s691
      // Predicated region
      $region33: #{multi_headed_attention.8} parent=31 // pred_check
        %p693 = pneg %p110
      $region34: #{multi_headed_attention.8} parent=31 // pred_check_branch
        %695 = sbr.rel (%p693) target = $region36
      $region35: #{multi_headed_attention.8} parent=31 // pred_region
        _
      $region36: #{multi_headed_attention.8} parent=31 // pred_fallthru
        _
    $region32: #{multi_headed_attention.8} parent=5 // pred_fallthru
      _
    %p696 = scmp.le.s32.totalorder 2, %s9
    // Predicated region
    $region37: #{multi_headed_attention.8} parent=5 // pred_check
      %p697 = pneg %p696
    $region38: #{multi_headed_attention.8} parent=5 // pred_check_branch
      %699 = sbr.rel (%p697) target = $region40
    $region39: #{multi_headed_attention.8} parent=5 // pred_region
      %s700 = ssub.s32 %s9, 2
      // Predicated region
      $region41: #{multi_headed_attention.8} parent=39 // pred_check
        %p701 = pneg %p116
      $region42: #{multi_headed_attention.8} parent=39 // pred_check_branch
        %703 = sbr.rel (%p701) target = $region44
      $region43: #{multi_headed_attention.8} parent=39 // pred_region
        %p704 = scmp.lt.s32.totalorder %s15, 1
        %s705 = scalar_select %p704, %s15, 1
        %s706 = smul.addr %s705, 8
        %s707 = scalar_lea.vmem %s3, %s706
      $region44: #{multi_headed_attention.8} parent=39 // pred_fallthru
        _
    $region40: #{multi_headed_attention.8} parent=5 // pred_fallthru
      _
  $region6: #{multi_headed_attention.8} parent=0 // loop_footer
    %s13 = sadd.s32 1, %s9
  $region7: #{multi_headed_attention.8} parent=0 // loop_footer_branch
    %8 = sbr.rel target = $region3
  $region8: #{multi_headed_attention.8} parent=0 // loop_exit
    _

</llo_original>
